<compile_context>
chip_gen: v5e
topology: v5e:2x2
jax: 0.10.0
libtpu: 0.0.40
codegen_flags: <defaults>
</compile_context>

<pallas_src>
import jax
import jax.numpy as jnp
from jax.experimental import pallas as pl
from jax.experimental.pallas import tpu as pltpu

EPS = 1e-5
NEG_BIG = -1e30  # finite "minus infinity": exp(NEG_BIG - m) underflows to exactly 0, no inf-inf NaN risk


def _bn_logsoftmax_kernel(x_ref, scale_ref, bias_ref, o_ref):
    # (tb, Cp) tile of activations and the resident (1, Cp) folded BN params; compute in f32.
    x = x_ref[...].astype(jnp.float32)
    scale = scale_ref[...].astype(jnp.float32)
    bias = bias_ref[...].astype(jnp.float32)

    # Folded BatchNorm1d (eval mode). Pad lanes have scale=0, bias=NEG_BIG -> y_pad = NEG_BIG.
    y = x * scale + bias

    # Numerically-stable log-softmax over the feature (lane) axis.
    m = jnp.max(y, axis=-1, keepdims=True)
    z = y - m
    lse = jnp.log(jnp.sum(jnp.exp(z), axis=-1, keepdims=True))
    o_ref[...] = (z - lse).astype(o_ref.dtype)


def bn_logsoftmax(x, gamma, beta, running_mean, running_var, *, tb=None):
    """x: (N, C). Params: (C,). Returns (N, C) log-probabilities (BatchNorm1d eval + LogSoftmax)."""
    n, c = x.shape
    out_dtype = x.dtype

    # ---- Fold BN params into a single scale/bias pair (done once on (C,)-sized arrays). ----
    scale = gamma.astype(jnp.float32) * jax.lax.rsqrt(running_var.astype(jnp.float32) + EPS)
    bias = beta.astype(jnp.float32) - running_mean.astype(jnp.float32) * scale

    # ---- Pad feature axis to a lane-dense multiple of 128. ----
    c_pad = ((c + 127) // 128) * 128
    if c_pad != c:
        x = jnp.pad(x, ((0, 0), (0, c_pad - c)))
        scale = jnp.pad(scale, (0, c_pad - c))                              # pad lanes: scale = 0
        bias = jnp.pad(bias, (0, c_pad - c), constant_values=NEG_BIG)       # pad lanes: bias = -1e30

    # ---- Choose the row tile from a VMEM budget (sized against v7x's smaller per-TC VMEM). ----
    if tb is None:
        budget_bytes = 8 << 20                      # live bytes target for the pipelined tiles
        bytes_per_row = c_pad * 4 * 4               # f32, 2x in + 2x out double-buffered
        tb = max(8, min(2048, budget_bytes // bytes_per_row))
        tb = (tb // 8) * 8                          # sublane multiple
    n_rounded = ((n + 7) // 8) * 8
    tb = min(tb, n_rounded)

    # ---- Pad the batch so the grid covers it exactly (no divisibility requirement on N). ----
    n_pad = pl.cdiv(n, tb) * tb
    if n_pad != n:
        x = jnp.pad(x, ((0, n_pad - n), (0, 0)))

    scale2 = scale.reshape(1, c_pad)
    bias2 = bias.reshape(1, c_pad)
    param_spec = pl.BlockSpec((1, c_pad), lambda i: (0, 0))

    out = pl.pallas_call(
        _bn_logsoftmax_kernel,
        out_shape=jax.ShapeDtypeStruct((n_pad, c_pad), out_dtype),
        grid_spec=pltpu.PrefetchScalarGridSpec(
            num_scalar_prefetch=0,
            grid=(n_pad // tb,),
            in_specs=[
                pl.BlockSpec((tb, c_pad), lambda i: (i, 0)),
                param_spec,
                param_spec,
            ],
            out_specs=pl.BlockSpec((tb, c_pad), lambda i: (i, 0)),
        ),
        compiler_params=pltpu.CompilerParams(
            dimension_semantics=("parallel",),
            vmem_limit_bytes=64 << 20,
        ),
    )(x, scale2, bias2)

    return out[:n, :c]


def reference(x, gamma, beta, running_mean, running_var):
    y = (x - running_mean) / jnp.sqrt(running_var + EPS) * gamma + beta
    return jax.nn.log_softmax(y, axis=1)


if __name__ == "__main__":
    key = jax.random.PRNGKey(0)
    kx, kg, kb, km, kv = jax.random.split(key, 5)

    N, C = 8, 64  # small shapes consistent with an (N, features) classifier tail
    x = jax.random.normal(kx, (N, C), dtype=jnp.float32)

    # Deterministic synthetic BatchNorm1d parameters / running stats.
    gamma = 1.0 + 0.1 * jax.random.normal(kg, (C,), dtype=jnp.float32)
    beta = 0.05 * jax.random.normal(kb, (C,), dtype=jnp.float32)
    running_mean = 0.1 * jax.random.normal(km, (C,), dtype=jnp.float32)
    running_var = jnp.abs(1.0 + 0.1 * jax.random.normal(kv, (C,), dtype=jnp.float32))

    out = bn_logsoftmax(x, gamma, beta, running_mean, running_var)
    out = jax.block_until_ready(out)

    ref = reference(x, gamma, beta, running_mean, running_var)
    assert out.shape == (N, C)
    assert jnp.allclose(out, ref, atol=1e-5, rtol=1e-5), "mismatch vs reference"

    print("KERNEL_OK")
</pallas_src>

<mosaic_0001>
module attributes {stable_mosaic.version = 11 : i64} {
  func.func @_bn_logsoftmax_kernel(%arg0: i32, %arg1: memref<8x128xf32, #tpu.memory_space<vmem>>, %arg2: memref<1x128xf32, #tpu.memory_space<vmem>>, %arg3: memref<1x128xf32, #tpu.memory_space<vmem>>, %arg4: memref<8x128xf32, #tpu.memory_space<vmem>>) attributes {dimension_semantics = [#tpu.dimension_semantics<parallel>], iteration_bounds = array<i64: 1>, scalar_prefetch = 0 : i64, scratch_operands = 0 : i64, tpu.core_type = #tpu.core_type<tc>, window_params = [{transform_indices = @transform_0, window_bounds = array<i64: 8, 128>}, {pipeline_mode = #tpu.pipeline_mode<synchronous>, transform_indices = @transform_1, window_bounds = array<i64: 1, 128>}, {pipeline_mode = #tpu.pipeline_mode<synchronous>, transform_indices = @transform_2, window_bounds = array<i64: 1, 128>}, {transform_indices = @transform_3, window_bounds = array<i64: 8, 128>}]} {
    %c0 = arith.constant 0 : index
    %c0_0 = arith.constant 0 : index
    %0 = vector.load %arg1[%c0, %c0_0] : memref<8x128xf32, #tpu.memory_space<vmem>>, vector<8x128xf32>
    %c0_1 = arith.constant 0 : index
    %c0_2 = arith.constant 0 : index
    %1 = vector.load %arg2[%c0_1, %c0_2] : memref<1x128xf32, #tpu.memory_space<vmem>>, vector<1x128xf32>
    %c0_3 = arith.constant 0 : index
    %c0_4 = arith.constant 0 : index
    %2 = vector.load %arg3[%c0_3, %c0_4] : memref<1x128xf32, #tpu.memory_space<vmem>>, vector<1x128xf32>
    %3 = vector.broadcast %1 : vector<1x128xf32> to vector<8x128xf32>
    %4 = arith.mulf %0, %3 : vector<8x128xf32>
    %5 = vector.broadcast %2 : vector<1x128xf32> to vector<8x128xf32>
    %6 = arith.addf %4, %5 : vector<8x128xf32>
    %cst = arith.constant dense<0xFF800000> : vector<8xf32>
    %7 = vector.multi_reduction <maximumf>, %6, %cst [1] : vector<8x128xf32> to vector<8xf32>
    %8 = vector.shape_cast %7 : vector<8xf32> to vector<8x1xf32>
    %9 = vector.broadcast %8 : vector<8x1xf32> to vector<8x128xf32>
    %10 = arith.subf %6, %9 : vector<8x128xf32>
    %11 = math.exp %10 : vector<8x128xf32>
    %cst_5 = arith.constant dense<0.000000e+00> : vector<8xf32>
    %12 = vector.multi_reduction <add>, %11, %cst_5 [1] : vector<8x128xf32> to vector<8xf32>
    %13 = vector.shape_cast %12 : vector<8xf32> to vector<8x1xf32>
    %14 = math.log %13 : vector<8x1xf32>
    %15 = vector.broadcast %14 : vector<8x1xf32> to vector<8x128xf32>
    %16 = arith.subf %10, %15 : vector<8x128xf32>
    %c0_6 = arith.constant 0 : index
    %c0_7 = arith.constant 0 : index
    %17 = vector.load %arg4[%c0_6, %c0_7] : memref<8x128xf32, #tpu.memory_space<vmem>>, vector<8x128xf32>
    tpu.vector_store %arg4[%c0_6, %c0_7], %16 {strides = array<i32>} : memref<8x128xf32, #tpu.memory_space<vmem>>, vector<8x128xf32>,
    return
  }
  func.func @transform_0(%arg0: i32) -> (i32, i32) {
    %c0_i32 = arith.constant 0 : i32
    %c0_i32_0 = arith.constant 0 : i32
    return %arg0, %c0_i32 : i32, i32
  }
  func.func @transform_1(%arg0: i32) -> (i32, i32) {
    %c0_i32 = arith.constant 0 : i32
    %c0_i32_0 = arith.constant 0 : i32
    %c0_i32_1 = arith.constant 0 : i32
    return %c0_i32, %c0_i32_0 : i32, i32
  }
  func.func @transform_2(%arg0: i32) -> (i32, i32) {
    %c0_i32 = arith.constant 0 : i32
    %c0_i32_0 = arith.constant 0 : i32
    %c0_i32_1 = arith.constant 0 : i32
    return %c0_i32, %c0_i32_0 : i32, i32
  }
  func.func @transform_3(%arg0: i32) -> (i32, i32) {
    %c0_i32 = arith.constant 0 : i32
    %c0_i32_0 = arith.constant 0 : i32
    return %arg0, %c0_i32 : i32, i32
  }
}

</mosaic_0001>

<llo_original>
// kernel: tpu_custom_call.1
$region0: #{tpu_custom_call.1}
  #allocation0 [shape = 'u32[]', space=smem, size = 0x4, offset = 0x4, fixed_abs, tag = 'smem constant byte address 0x4 - core index']
  #allocation1 [shape = 'u32[72,128]{1,0:T(1,128)}', space=vmem, size = 0x9000, scoped, tag = 'internal scratch']
  %s0 = inlined_call_operand.hbm [shape: f32[8,128], index: 0, kind: input, shape index: {}]
  %s1 = inlined_call_operand.hbm [shape: f32[1,128], index: 1, kind: input, shape index: {}]
  %s2 = inlined_call_operand.vmem [shape: f32[1,128], index: 2, kind: input, shape index: {}]
  %s3 = inlined_call_operand.hbm [shape: f32[8,128], index: 3, kind: output, shape index: {}]
  %s4 = sld [smem:[#allocation0]]
  $region30: #{tpu_custom_call.1} parent=0
    _
  %s6 = ssub.s32 1, %s4
  %s7 = scalar_select 0, %s6, %s4
  $region1: #{tpu_custom_call.1} parent=0
    #allocation2 [shape = 'u8[4096]{0}', space=vmem, size = 0x1000, scoped, tag = 'input window, operand 0, single buffered']
    #allocation3 [shape = 's32[1]{0}', space=sflag, size = 0x4, scoped, tag = 'scoped memory for tpu_custom_call.1']
    #allocation4 [shape = 's32[1]{0}', space=sflag, size = 0x4, scoped, tag = 'scoped memory for tpu_custom_call.1']
    #allocation5 [shape = 'u8[512]{0}', space=vmem, size = 0x400, scoped, tag = 'input window, operand 1, single buffered']
    #allocation6 [shape = 's32[1]{0}', space=sflag, size = 0x4, scoped, tag = 'scoped memory for tpu_custom_call.1']
    #allocation7 [shape = 'u8[4096]{0}', space=vmem, size = 0x1000, scoped, tag = 'output window, operand 0, single buffered']
    %8 = vsyncpa [#allocation3], 0
    %9 = vsyncpa [#allocation6], 0
    %10 = vsyncpa [#allocation4], 0
    // Predicated region
    $region2: #{tpu_custom_call.1} parent=1 // pred_check
      _
    $region3: #{tpu_custom_call.1} parent=1 // pred_check_branch
      %12 = sbr.rel (0) target = $region5
    $region4: #{tpu_custom_call.1} parent=1 // pred_region
      %14 = vsyncadd [#allocation3], 0
      %s16 = sshll.u32 %s0, 4
      %s17 = int_to_ptr.hbm [resolvable:$true] %s16
      %s18 = sshll.u32 [#allocation2], 4
      %s19 = int_to_ptr.vmem [resolvable:$true] %s18
      %21 = dma.hbm_to_vmem [thread:$0]  %s17, 128, %s19, [#allocation3]
    $region5: #{tpu_custom_call.1} parent=1 // pred_fallthru
      _
    // Predicated region
    $region6: #{tpu_custom_call.1} parent=1 // pred_check
      _
    $region7: #{tpu_custom_call.1} parent=1 // pred_check_branch
      %23 = sbr.rel (0) target = $region9
    $region8: #{tpu_custom_call.1} parent=1 // pred_region
      %25 = vsyncadd [#allocation6], 0
      %s27 = sshll.u32 %s1, 4
      %s28 = int_to_ptr.hbm [resolvable:$true] %s27
      %s29 = sshll.u32 [#allocation5], 4
      %s30 = int_to_ptr.vmem [resolvable:$true] %s29
      %32 = dma.hbm_to_vmem [thread:$0]  %s28, 16, %s30, [#allocation6]
    $region9: #{tpu_custom_call.1} parent=1 // pred_fallthru
      _
    // Predicated region
    $region10: #{tpu_custom_call.1} parent=1 // pred_check
      _
    $region11: #{tpu_custom_call.1} parent=1 // pred_check_branch
      %34 = sbr.rel (0) target = $region13
    $region12: #{tpu_custom_call.1} parent=1 // pred_region
      _
    $region13: #{tpu_custom_call.1} parent=1 // pred_fallthru
      _
    // Predicated region
    $region14: #{tpu_custom_call.1} parent=1 // pred_check
      _
    $region15: #{tpu_custom_call.1} parent=1 // pred_check_branch
      %36 = sbr.rel (0) target = $region17
    $region16: #{tpu_custom_call.1} parent=1 // pred_region
      %38 = dma.done [#allocation3], 128
    $region17: #{tpu_custom_call.1} parent=1 // pred_fallthru
      _
    // Predicated region
    $region18: #{tpu_custom_call.1} parent=1 // pred_check
      _
    $region19: #{tpu_custom_call.1} parent=1 // pred_check_branch
      %40 = sbr.rel (0) target = $region21
    $region20: #{tpu_custom_call.1} parent=1 // pred_region
      %42 = dma.done [#allocation6], 16
    $region21: #{tpu_custom_call.1} parent=1 // pred_fallthru
      _
    %v43 = vld [vmem:[#allocation2] sm:$0xff]
    %v44 = vld [vmem:[#allocation5] sm:$0x1]
    %v45 = vld [vmem:[%s2] sm:$0x1]
    %v47 = vperm.slane %v44, 0
    %v49 = vmul.f32 %v43, %v47
    %v51 = vperm.slane %v45, 0
    %v53 = vadd.f32 %v49, %v51
    %54 = vmax.xlane.f32.xlu0 %v53
    %v55 = vpop.xlane.xlu0 %54
    %v56 = vsub.f32 %v53, %v55
    %v57 = vmul.f32 %v56, 1.442695
    %v58 = vpow.pop %v57
    %59 = vadd.xlane.f32.xlu0 %v58
    %v60 = vpop.xlane.xlu0 %59
    %v61 = vlog2.pop %v60
    %v62 = vmul.f32 %v61, 0.6931472
    %v63 = vsub.f32 %v56, %v62
    %64 = vst [vmem:[#allocation7] sm:$0xff] %v63
    // Predicated region
    $region22: #{tpu_custom_call.1} parent=1 // pred_check
      _
    $region23: #{tpu_custom_call.1} parent=1 // pred_check_branch
      %66 = sbr.rel (0) target = $region25
    $region24: #{tpu_custom_call.1} parent=1 // pred_region
      %68 = vsyncadd [#allocation4], 0
      %s70 = sshll.u32 [#allocation7], 4
      %s71 = int_to_ptr.vmem [resolvable:$true] %s70
      %s72 = sshll.u32 %s3, 4
      %s73 = int_to_ptr.hbm [resolvable:$true] %s72
      %75 = dma.vmem_to_hbm [thread:$0]  %s71, 128, %s73, [#allocation4]
    $region25: #{tpu_custom_call.1} parent=1 // pred_fallthru
      _
    // Predicated region
    $region26: #{tpu_custom_call.1} parent=1 // pred_check
      _
    $region27: #{tpu_custom_call.1} parent=1 // pred_check_branch
      %77 = sbr.rel (0) target = $region29
    $region28: #{tpu_custom_call.1} parent=1 // pred_region
      %79 = dma.done [#allocation4], 128
    $region29: #{tpu_custom_call.1} parent=1 // pred_fallthru
      _
    %80 = vsyncpa [#allocation3], 1
    %81 = vsyncpa [#allocation6], 1
    %82 = vsyncpa [#allocation4], 1

</llo_original>
